<compile_context>
chip_gen: v7x
topology: tpu7x:2x2x1
jax: 0.10.0
libtpu: 0.0.40
codegen_flags: <defaults>
</compile_context>

<pallas_src>
import functools

import jax
import jax.numpy as jnp
from jax.experimental import pallas as pl
from jax.experimental.pallas import tpu as pltpu

EPS = 1e-5          # torch BatchNorm2d default
POOL = 2            # pool_size = pool_strides = 2
STATS_LANES = 128   # lane width of the per-tile partial-moment outputs


def conv_stats_kernel(p_ref, w_ref, y_ref, s_ref, q_ref):
    """Phase 1: conv of all 4 pool positions as ONE bf16 GEMM (f32 accumulate)
    plus per-tile BatchNorm partial moments (no cross-tile accumulation, so the
    whole grid is 'parallel' and megacore-shardable).

    p_ref: (1, QR, T)    bf16 patch columns (lanes = pooled pixels of one image)
    w_ref: (PR, QR)      bf16 zero-padded weights (all 4 pool positions at once)
    y_ref: (1, PR, T)    bf16 conv output tile
    s_ref: (1, PR, 128)  f32 per-tile sum            (broadcast along lanes)
    q_ref: (1, PR, 128)  f32 per-tile sum of squares (broadcast along lanes)
    """
    y = jnp.dot(w_ref[...], p_ref[0], preferred_element_type=jnp.float32)
    y_ref[...] = y.astype(y_ref.dtype)[None]
    s = jnp.sum(y, axis=1, keepdims=True)          # XLU lane reduce (free slot)
    q = jnp.sum(y * y, axis=1, keepdims=True)
    s_ref[...] = jnp.broadcast_to(s, s_ref.shape[1:])[None]
    q_ref[...] = jnp.broadcast_to(q, q_ref.shape[1:])[None]


def bn_relu_pool_kernel(y_ref, scale_ref, shift_ref, o_ref, *, c_out: int):
    """Phase 2: folded BN (y*scale+shift), ReLU, 2x2 max-pool over pos groups.

    y_ref:     (1, PR, T)    bf16
    scale_ref: (PR, 1)       f32
    shift_ref: (PR, 1)       f32
    o_ref:     (1, Cout, T)  f32 — already in (N, Cout, Ho*Wo) layout
    """
    y = y_ref[0].astype(jnp.float32)               # cast right after load (v5e: no bf16 VALU)
    z = jnp.maximum(y * scale_ref[...] + shift_ref[...], 0.0)
    p01 = jnp.maximum(z[0 * c_out:1 * c_out, :], z[1 * c_out:2 * c_out, :])
    p23 = jnp.maximum(z[2 * c_out:3 * c_out, :], z[3 * c_out:4 * c_out, :])
    o_ref[...] = jnp.maximum(p01, p23)[None]


def _pick_tile_hw(hw: int, cap: int = 4096) -> int:
    """Largest legal lane tile: whole per-image plane if it fits under `cap`,
    otherwise the largest multiple of 128 <= cap that divides it."""
    if hw <= cap:
        return hw
    for cand in range(cap - cap % 128, 0, -128):
        if hw % cand == 0:
            return cand
    # TODO(synk): ragged Ho*Wo (> cap and not 128-divisible) would need masked
    # moment sums / padded-pixel masking; not handled here.
    raise ValueError(f"Ho*Wo={hw} has no 128-multiple tile <= {cap}")


def base_conv_block_cnap(x_nchw, w, b, gamma, beta):
    """x: (N, Cin, H, W) f32;  w: (KH, KW, Cin, Cout);  b/gamma/beta: (Cout,).

    The conv bias `b` is accepted for API parity but never materialised: a
    per-channel constant added before BatchNorm cancels exactly in the folded
    shift (and keeping it would only hurt the E[y^2]-E[y]^2 variance numerics).
    """
    del b
    N, Cin, H, W = x_nchw.shape
    KH, KW, _, Cout = w.shape
    assert KH % 2 == 1 and KW % 2 == 1, "only odd 'same' kernels supported"
    assert H % POOL == 0 and W % POOL == 0, "spatial dims must be pool-divisible"
    Ho, Wo = H // POOL, W // POOL
    HW = Ho * Wo                                   # pooled pixels per image
    WIN_H, WIN_W = POOL + KH - 1, POOL + KW - 1    # input window per pooled pixel
    QR = WIN_H * WIN_W * Cin                       # patch rows (= 64 here)
    PR = POOL * POOL * Cout                        # conv rows  (= 32 here)

    tile_hw = _pick_tile_hw(HW)
    G = HW // tile_hw                              # pixel tiles per image
    grid = (N, G)

    # ---- host-side layout prep: compact, lane-dense bf16 patch matrix (4x dup) ----
    # TODO(synk): for large inputs, move tap formation in-kernel (halo DMAs over
    # the padded NHWC input) to cut the duplicated HBM stream.
    x = jnp.transpose(x_nchw, (0, 2, 3, 1))                          # NHWC
    ph, pw = KH // 2, KW // 2
    xp = jnp.pad(x, ((0, 0), (ph, ph), (pw, pw), (0, 0))).astype(jnp.bfloat16)
    taps = []
    for rh in range(WIN_H):
        for rw in range(WIN_W):
            sl = xp[:, rh:rh + POOL * Ho:POOL, rw:rw + POOL * Wo:POOL, :]   # (N,Ho,Wo,Cin)
            taps.append(jnp.transpose(sl, (0, 3, 1, 2)).reshape(N, Cin, HW))
    p_t = jnp.concatenate(taps, axis=1)                              # (N, QR, HW) bf16

    # zero-padded weight: ONE GEMM yields the conv at all 4 pooling positions
    w_t = jnp.zeros((PR, QR), jnp.float32)
    for dh in range(POOL):
        for dw in range(POOL):
            r0 = (dh * POOL + dw) * Cout
            for kh in range(KH):
                for kw in range(KW):
                    q0 = ((dh + kh) * WIN_W + (dw + kw)) * Cin
                    w_t = w_t.at[r0:r0 + Cout, q0:q0 + Cin].set(w[kh, kw].T)
    w_t = w_t.astype(jnp.bfloat16)

    Mtot = N * HW
    flops1 = 2 * PR * QR * Mtot + 4 * PR * Mtot
    bytes1 = (QR * Mtot * 2 + PR * QR * 2 + PR * Mtot * 2
              + 2 * N * G * PR * STATS_LANES * 4)

    # ---- phase 1: conv GEMM + per-tile BN partial moments (fully parallel grid) ----
    y_t, s_part, q_part = pl.pallas_call(
        conv_stats_kernel,
        grid=grid,
        in_specs=[pl.BlockSpec((1, QR, tile_hw), lambda n, j: (n, 0, j)),
                  pl.BlockSpec((PR, QR), lambda n, j: (0, 0))],
        out_specs=[pl.BlockSpec((1, PR, tile_hw), lambda n, j: (n, 0, j)),
                   pl.BlockSpec((1, PR, STATS_LANES), lambda n, j: (n, 0, j)),
                   pl.BlockSpec((1, PR, STATS_LANES), lambda n, j: (n, 0, j))],
        out_shape=[jax.ShapeDtypeStruct((N, PR, HW), jnp.bfloat16),
                   jax.ShapeDtypeStruct((N, PR, G * STATS_LANES), jnp.float32),
                   jax.ShapeDtypeStruct((N, PR, G * STATS_LANES), jnp.float32)],
        compiler_params=pltpu.CompilerParams(
            dimension_semantics=("parallel", "parallel"),    # megacore-shardable on v7x
            vmem_limit_bytes=32 * 1024 * 1024),
        cost_estimate=pl.CostEstimate(flops=flops1, transcendentals=0,
                                      bytes_accessed=bytes1),
    )(p_t, w_t)

    # ---- tiny wrapper-side reduction of partial moments -> folded scale/shift ----
    count = float(POOL * POOL * Mtot)                                # = N*H*W
    s_lane0 = s_part.reshape(N, PR, G, STATS_LANES)[..., 0]
    q_lane0 = q_part.reshape(N, PR, G, STATS_LANES)[..., 0]
    ch_sum = jnp.sum(s_lane0, axis=(0, 2)).reshape(POOL * POOL, Cout).sum(axis=0)
    ch_sq = jnp.sum(q_lane0, axis=(0, 2)).reshape(POOL * POOL, Cout).sum(axis=0)
    mean = ch_sum / count
    var = ch_sq / count - mean * mean                                # biased (training mode)
    scale = gamma * jax.lax.rsqrt(var + EPS)
    shift = beta - mean * scale                                      # conv bias cancels here
    scale_col = jnp.tile(scale, POOL * POOL).reshape(PR, 1).astype(jnp.float32)
    shift_col = jnp.tile(shift, POOL * POOL).reshape(PR, 1).astype(jnp.float32)

    flops2 = 6 * PR * Mtot
    bytes2 = PR * Mtot * 2 + Cout * Mtot * 4 + 2 * PR * 4

    # ---- phase 2: folded BN + ReLU + 2x2 max-pool, output directly in NCHW order ----
    out = pl.pallas_call(
        functools.partial(bn_relu_pool_kernel, c_out=Cout),
        grid=grid,
        in_specs=[pl.BlockSpec((1, PR, tile_hw), lambda n, j: (n, 0, j)),
                  pl.BlockSpec((PR, 1), lambda n, j: (0, 0)),
                  pl.BlockSpec((PR, 1), lambda n, j: (0, 0))],
        out_specs=pl.BlockSpec((1, Cout, tile_hw), lambda n, j: (n, 0, j)),
        out_shape=jax.ShapeDtypeStruct((N, Cout, HW), jnp.float32),
        compiler_params=pltpu.CompilerParams(
            dimension_semantics=("parallel", "parallel"),
            vmem_limit_bytes=32 * 1024 * 1024),
        cost_estimate=pl.CostEstimate(flops=flops2, transcendentals=0,
                                      bytes_accessed=bytes2),
    )(y_t, scale_col, shift_col)

    return out.reshape(N, Cout, Ho, Wo)                              # NCHW, no transpose


def reference(x_nchw, w, b, gamma, beta):
    """Pure-JAX f32 reference of BaseConvBlock(layout='cnap') forward (training mode)."""
    y = jax.lax.conv_general_dilated(
        x_nchw, jnp.transpose(w, (3, 2, 0, 1)),        # OIHW
        window_strides=(1, 1), padding='SAME',
        dimension_numbers=('NCHW', 'OIHW', 'NCHW'),
        precision=jax.lax.Precision.HIGHEST)
    y = y + b[None, :, None, None]
    mean = jnp.mean(y, axis=(0, 2, 3), keepdims=True)
    var = jnp.mean((y - mean) ** 2, axis=(0, 2, 3), keepdims=True)
    y = (y - mean) * jax.lax.rsqrt(var + EPS)
    y = y * gamma[None, :, None, None] + beta[None, :, None, None]
    y = jnp.maximum(y, 0.0)
    y = jax.lax.reduce_window(y, -jnp.inf, jax.lax.max,
                              (1, 1, 2, 2), (1, 1, 2, 2), 'VALID')
    return y


if __name__ == "__main__":
    # TODO(synk): BaseConvBlock is a config-driven meta-module (dozens of layout
    # letters); only the canonical 'cnap' instantiation is implemented here.
    # TODO(synk): PyTorch BatchNorm2d (training) also updates running_mean/var;
    # this forward-only kernel computes batch statistics but keeps no state.
    key = jax.random.PRNGKey(0)
    k1, k2, k3, k4, k5 = jax.random.split(key, 5)
    N, Cin, H, W = 2, 4, 16, 16
    Cout, K = 8, 3

    x = jax.random.normal(k1, (N, Cin, H, W), jnp.float32)
    w = jax.random.normal(k2, (K, K, Cin, Cout), jnp.float32) * 0.2
    b = jax.random.normal(k3, (Cout,), jnp.float32) * 0.1
    gamma = 1.0 + 0.1 * jax.random.normal(k4, (Cout,), jnp.float32)
    beta = 0.1 * jax.random.normal(k5, (Cout,), jnp.float32)

    out = jax.jit(base_conv_block_cnap)(x, w, b, gamma, beta)
    out = jax.block_until_ready(out)

    ref = reference(x, w, b, gamma, beta)
    assert out.shape == (N, Cout, H // 2, W // 2), out.shape
    max_err = float(jnp.max(jnp.abs(out - ref)))
    # bf16 GEMM inputs + bf16 conv intermediate -> compare with bf16-level tolerance
    assert jnp.allclose(out, ref, rtol=2e-2, atol=2e-2), max_err
    print("KERNEL_OK")
</pallas_src>

<mosaic_0001>
module attributes {stable_mosaic.version = 11 : i64} {
  func.func @conv_stats_kernel(%arg0: i32, %arg1: i32, %arg2: memref<1x64x64xbf16, #tpu.memory_space<vmem>>, %arg3: memref<32x64xbf16, #tpu.memory_space<vmem>>, %arg4: memref<1x32x64xbf16, #tpu.memory_space<vmem>>, %arg5: memref<1x32x128xf32, #tpu.memory_space<vmem>>, %arg6: memref<1x32x128xf32, #tpu.memory_space<vmem>>) attributes {dimension_semantics = [#tpu.dimension_semantics<parallel>, #tpu.dimension_semantics<parallel>], iteration_bounds = array<i64: 2, 1>, scalar_prefetch = 0 : i64, scratch_operands = 0 : i64, tpu.core_type = #tpu.core_type<tc>, window_params = [{transform_indices = @transform_0, window_bounds = array<i64: 1, 64, 64>}, {pipeline_mode = #tpu.pipeline_mode<synchronous>, transform_indices = @transform_1, window_bounds = array<i64: 32, 64>}, {transform_indices = @transform_2, window_bounds = array<i64: 1, 32, 64>}, {transform_indices = @transform_3, window_bounds = array<i64: 1, 32, 128>}, {transform_indices = @transform_4, window_bounds = array<i64: 1, 32, 128>}]} {
    %c0 = arith.constant 0 : index
    %c0_0 = arith.constant 0 : index
    %0 = vector.load %arg3[%c0, %c0_0] : memref<32x64xbf16, #tpu.memory_space<vmem>>, vector<32x64xbf16>
    %c0_1 = arith.constant 0 : index
    %c0_2 = arith.constant 0 : index
    %c0_3 = arith.constant 0 : index
    %1 = vector.load %arg2[%c0_1, %c0_2, %c0_3] : memref<1x64x64xbf16, #tpu.memory_space<vmem>>, vector<1x64x64xbf16>
    %2 = vector.shape_cast %1 : vector<1x64x64xbf16> to vector<64x64xbf16>
    %cst = arith.constant dense<0.000000e+00> : vector<32x64xf32>
    %3 = tpu.matmul %0, %2, %cst {dimension_numbers = #tpu.dot_dimension_numbers<[1], [0], [0], [1], [0, 0, 1, 1], [], []>} : vector<32x64xbf16>, vector<64x64xbf16>, vector<32x64xf32> -> vector<32x64xf32>
    %4 = arith.truncf %3 : vector<32x64xf32> to vector<32x64xbf16>
    %5 = vector.shape_cast %4 : vector<32x64xbf16> to vector<1x32x64xbf16>
    %c0_4 = arith.constant 0 : index
    %c0_5 = arith.constant 0 : index
    %c0_6 = arith.constant 0 : index
    %6 = vector.load %arg4[%c0_4, %c0_5, %c0_6] : memref<1x32x64xbf16, #tpu.memory_space<vmem>>, vector<1x32x64xbf16>
    tpu.vector_store %arg4[%c0_4, %c0_5, %c0_6], %5 {strides = array<i32>} : memref<1x32x64xbf16, #tpu.memory_space<vmem>>, vector<1x32x64xbf16>,
    %cst_7 = arith.constant dense<0.000000e+00> : vector<32xf32>
    %7 = vector.multi_reduction <add>, %3, %cst_7 [1] : vector<32x64xf32> to vector<32xf32>
    %8 = vector.shape_cast %7 : vector<32xf32> to vector<32x1xf32>
    %9 = arith.mulf %3, %3 : vector<32x64xf32>
    %cst_8 = arith.constant dense<0.000000e+00> : vector<32xf32>
    %10 = vector.multi_reduction <add>, %9, %cst_8 [1] : vector<32x64xf32> to vector<32xf32>
    %11 = vector.shape_cast %10 : vector<32xf32> to vector<32x1xf32>
    %12 = vector.shape_cast %8 : vector<32x1xf32> to vector<32x1xf32>
    %13 = vector.broadcast %12 : vector<32x1xf32> to vector<32x128xf32>
    %14 = vector.shape_cast %13 : vector<32x128xf32> to vector<1x32x128xf32>
    %c0_9 = arith.constant 0 : index
    %c0_10 = arith.constant 0 : index
    %c0_11 = arith.constant 0 : index
    %15 = vector.load %arg5[%c0_9, %c0_10, %c0_11] : memref<1x32x128xf32, #tpu.memory_space<vmem>>, vector<1x32x128xf32>
    tpu.vector_store %arg5[%c0_9, %c0_10, %c0_11], %14 {strides = array<i32>} : memref<1x32x128xf32, #tpu.memory_space<vmem>>, vector<1x32x128xf32>,
    %16 = vector.shape_cast %11 : vector<32x1xf32> to vector<32x1xf32>
    %17 = vector.broadcast %16 : vector<32x1xf32> to vector<32x128xf32>
    %18 = vector.shape_cast %17 : vector<32x128xf32> to vector<1x32x128xf32>
    %c0_12 = arith.constant 0 : index
    %c0_13 = arith.constant 0 : index
    %c0_14 = arith.constant 0 : index
    %19 = vector.load %arg6[%c0_12, %c0_13, %c0_14] : memref<1x32x128xf32, #tpu.memory_space<vmem>>, vector<1x32x128xf32>
    tpu.vector_store %arg6[%c0_12, %c0_13, %c0_14], %18 {strides = array<i32>} : memref<1x32x128xf32, #tpu.memory_space<vmem>>, vector<1x32x128xf32>,
    return
  }
  func.func @transform_0(%arg0: i32, %arg1: i32) -> (i32, i32, i32) {
    %c0_i32 = arith.constant 0 : i32
    %c0_i32_0 = arith.constant 0 : i32
    return %arg0, %c0_i32, %arg1 : i32, i32, i32
  }
  func.func @transform_1(%arg0: i32, %arg1: i32) -> (i32, i32) {
    %c0_i32 = arith.constant 0 : i32
    %c0_i32_0 = arith.constant 0 : i32
    %c0_i32_1 = arith.constant 0 : i32
    return %c0_i32, %c0_i32_0 : i32, i32
  }
  func.func @transform_2(%arg0: i32, %arg1: i32) -> (i32, i32, i32) {
    %c0_i32 = arith.constant 0 : i32
    %c0_i32_0 = arith.constant 0 : i32
    return %arg0, %c0_i32, %arg1 : i32, i32, i32
  }
  func.func @transform_3(%arg0: i32, %arg1: i32) -> (i32, i32, i32) {
    %c0_i32 = arith.constant 0 : i32
    %c0_i32_0 = arith.constant 0 : i32
    return %arg0, %c0_i32, %arg1 : i32, i32, i32
  }
  func.func @transform_4(%arg0: i32, %arg1: i32) -> (i32, i32, i32) {
    %c0_i32 = arith.constant 0 : i32
    %c0_i32_0 = arith.constant 0 : i32
    return %arg0, %c0_i32, %arg1 : i32, i32, i32
  }
}

module attributes {stable_mosaic.version = 11 : i64} {
  func.func @bn_relu_pool_kernel(%arg0: i32, %arg1: i32, %arg2: memref<1x32x64xbf16, #tpu.memory_space<vmem>>, %arg3: memref<32x1xf32, #tpu.memory_space<vmem>>, %arg4: memref<32x1xf32, #tpu.memory_space<vmem>>, %arg5: memref<1x8x64xf32, #tpu.memory_space<vmem>>) attributes {dimension_semantics = [#tpu.dimension_semantics<parallel>, #tpu.dimension_semantics<parallel>], iteration_bounds = array<i64: 2, 1>, scalar_prefetch = 0 : i64, scratch_operands = 0 : i64, tpu.core_type = #tpu.core_type<tc>, window_params = [{transform_indices = @transform_0, window_bounds = array<i64: 1, 32, 64>}, {pipeline_mode = #tpu.pipeline_mode<synchronous>, transform_indices = @transform_1, window_bounds = array<i64: 32, 1>}, {pipeline_mode = #tpu.pipeline_mode<synchronous>, transform_indices = @transform_2, window_bounds = array<i64: 32, 1>}, {transform_indices = @transform_3, window_bounds = array<i64: 1, 8, 64>}]} {
    %c0 = arith.constant 0 : index
    %c0_0 = arith.constant 0 : index
    %c0_1 = arith.constant 0 : index
    %0 = vector.load %arg2[%c0, %c0_0, %c0_1] : memref<1x32x64xbf16, #tpu.memory_space<vmem>>, vector<1x32x64xbf16>
    %1 = vector.shape_cast %0 : vector<1x32x64xbf16> to vector<32x64xbf16>
    %2 = arith.extf %1 : vector<32x64xbf16> to vector<32x64xf32>
    %c0_2 = arith.constant 0 : index
    %c0_3 = arith.constant 0 : index
    %3 = vector.load %arg3[%c0_2, %c0_3] : memref<32x1xf32, #tpu.memory_space<vmem>>, vector<32x1xf32>
    %4 = vector.broadcast %3 : vector<32x1xf32> to vector<32x64xf32>
    %5 = arith.mulf %2, %4 : vector<32x64xf32>
    %c0_4 = arith.constant 0 : index
    %c0_5 = arith.constant 0 : index
    %6 = vector.load %arg4[%c0_4, %c0_5] : memref<32x1xf32, #tpu.memory_space<vmem>>, vector<32x1xf32>
    %7 = vector.broadcast %6 : vector<32x1xf32> to vector<32x64xf32>
    %8 = arith.addf %5, %7 : vector<32x64xf32>
    %cst = arith.constant 0.000000e+00 : f32
    %9 = vector.broadcast %cst : f32 to vector<32x64xf32>
    %10 = arith.maximumf %8, %9 : vector<32x64xf32>
    %11 = vector.extract_strided_slice %10 {offsets = [0, 0], sizes = [8, 64], strides = [1, 1]} : vector<32x64xf32> to vector<8x64xf32>
    %12 = vector.extract_strided_slice %10 {offsets = [8, 0], sizes = [8, 64], strides = [1, 1]} : vector<32x64xf32> to vector<8x64xf32>
    %13 = arith.maximumf %11, %12 : vector<8x64xf32>
    %14 = vector.extract_strided_slice %10 {offsets = [16, 0], sizes = [8, 64], strides = [1, 1]} : vector<32x64xf32> to vector<8x64xf32>
    %15 = vector.extract_strided_slice %10 {offsets = [24, 0], sizes = [8, 64], strides = [1, 1]} : vector<32x64xf32> to vector<8x64xf32>
    %16 = arith.maximumf %14, %15 : vector<8x64xf32>
    %17 = arith.maximumf %13, %16 : vector<8x64xf32>
    %18 = vector.shape_cast %17 : vector<8x64xf32> to vector<1x8x64xf32>
    %c0_6 = arith.constant 0 : index
    %c0_7 = arith.constant 0 : index
    %c0_8 = arith.constant 0 : index
    %19 = vector.load %arg5[%c0_6, %c0_7, %c0_8] : memref<1x8x64xf32, #tpu.memory_space<vmem>>, vector<1x8x64xf32>
    tpu.vector_store %arg5[%c0_6, %c0_7, %c0_8], %18 {strides = array<i32>} : memref<1x8x64xf32, #tpu.memory_space<vmem>>, vector<1x8x64xf32>,
    return
  }
  func.func @transform_0(%arg0: i32, %arg1: i32) -> (i32, i32, i32) {
    %c0_i32 = arith.constant 0 : i32
    %c0_i32_0 = arith.constant 0 : i32
    return %arg0, %c0_i32, %arg1 : i32, i32, i32
  }
  func.func @transform_1(%arg0: i32, %arg1: i32) -> (i32, i32) {
    %c0_i32 = arith.constant 0 : i32
    %c0_i32_0 = arith.constant 0 : i32
    %c0_i32_1 = arith.constant 0 : i32
    return %c0_i32, %c0_i32_0 : i32, i32
  }
  func.func @transform_2(%arg0: i32, %arg1: i32) -> (i32, i32) {
    %c0_i32 = arith.constant 0 : i32
    %c0_i32_0 = arith.constant 0 : i32
    %c0_i32_1 = arith.constant 0 : i32
    return %c0_i32, %c0_i32_0 : i32, i32
  }
  func.func @transform_3(%arg0: i32, %arg1: i32) -> (i32, i32, i32) {
    %c0_i32 = arith.constant 0 : i32
    %c0_i32_0 = arith.constant 0 : i32
    return %arg0, %c0_i32, %arg1 : i32, i32, i32
  }
}

</mosaic_0001>

<llo_original>
// kernel: tile.18
$region0: #{tile.18}
  #allocation0 [shape = 's32[1]{0}', space=sflag, size = 0x4, scoped, tag = 'scoped memory for tile.18']
  %s0 = inlined_call_operand.vmem [shape: f32[8], index: 0, kind: input, shape index: {}]
  %s1 = inlined_call_operand.vmem [shape: f32[4,8], index: 1, kind: output, shape index: {}]
  // Predicated region
  $region2: #{tile.18} parent=0 // pred_check
    _
  $region3: #{tile.18} parent=0 // pred_check_branch
    %3 = sbr.rel (0) target = $region5
  $region4: #{tile.18} parent=0 // pred_region
    _
  $region5: #{tile.18} parent=0 // pred_fallthru
    _
  %v4 = vld [vmem:[%s0] ss:$0 sm:$0xff]
  %5 = vst [vmem:[%s1] sm:$0xf] %v4

// kernel: tile.0
$region0: #{tile.0}
  %s0 = inlined_call_operand.vmem [shape: f32[4,8], index: 0, kind: input, shape index: {}]
  %s1 = inlined_call_operand.vmem [shape: f32[32,1], index: 1, kind: output, shape index: {}]
  $region1: #{tile.0} parent=0
    #allocation0 [shape = 'u8[4096]{0}', space=vmem, size = 0x1000, scoped, tag = 'scoped mem for input reshape']
    %s3 = sshllo.u32 0, 4
    %v4 = vld [vmem:[%s0] sm:%s3]
    %5 = vst [vmem:[#allocation0] sm:%s3] %v4
    %v6 = vld [vmem:[#allocation0] sm:$0xf]
    %vm7 = vcmask 7168
    %8 = vst.msk [vmem:[%s1] ss:$8 sm:$0xf] %vm7, %v6
    %v9 = vld [vmem:[#allocation0] sm:$0xf]
    %10 = vrot.lane.b32.xlu0 %v9, 127
    %v11 = vpop.permute.xlu0 %10
    %vm12 = vcmask 7168
    %s13 = scalar_lea.vmem %s1, 1
    %14 = vst.msk [vmem:[%s13] ss:$8 sm:$0xf] %vm12, %v11
    %v15 = vld [vmem:[#allocation0] sm:$0xf]
    %16 = vrot.lane.b32.xlu0 %v15, 126
    %v17 = vpop.permute.xlu0 %16
    %vm18 = vcmask 7168
    %s19 = scalar_lea.vmem %s1, 2
    %20 = vst.msk [vmem:[%s19] ss:$8 sm:$0xf] %vm18, %v17
    %v21 = vld [vmem:[#allocation0] sm:$0xf]
    %22 = vrot.lane.b32.xlu0 %v21, 125
    %v23 = vpop.permute.xlu0 %22
    %vm24 = vcmask 7168
    %s25 = scalar_lea.vmem %s1, 3
    %26 = vst.msk [vmem:[%s25] ss:$8 sm:$0xf] %vm24, %v23
    %v27 = vld [vmem:[#allocation0] sm:$0xf]
    %28 = vrot.lane.b32.xlu0 %v27, 124
    %v29 = vpop.permute.xlu0 %28
    %vm30 = vcmask 7168
    %s31 = scalar_lea.vmem %s1, 4
    %32 = vst.msk [vmem:[%s31] ss:$8 sm:$0xf] %vm30, %v29
    %v33 = vld [vmem:[#allocation0] sm:$0xf]
    %34 = vrot.lane.b32.xlu0 %v33, 123
    %v35 = vpop.permute.xlu0 %34
    %vm36 = vcmask 7168
    %s37 = scalar_lea.vmem %s1, 5
    %38 = vst.msk [vmem:[%s37] ss:$8 sm:$0xf] %vm36, %v35
    %v39 = vld [vmem:[#allocation0] sm:$0xf]
    %40 = vrot.lane.b32.xlu0 %v39, 122
    %v41 = vpop.permute.xlu0 %40
    %vm42 = vcmask 7168
    %s43 = scalar_lea.vmem %s1, 6
    %44 = vst.msk [vmem:[%s43] ss:$8 sm:$0xf] %vm42, %v41
    %v45 = vld [vmem:[#allocation0] sm:$0xf]
    %46 = vrot.lane.b32.xlu0 %v45, 121
    %v47 = vpop.permute.xlu0 %46
    %vm48 = vcmask 7168
    %s49 = scalar_lea.vmem %s1, 7
    %50 = vst.msk [vmem:[%s49] ss:$8 sm:$0xf] %vm48, %v47

// kernel: base_conv_block_cnap.3
$region0: #{base_conv_block_cnap.3}
  #allocation0 [shape = 'u32[]', space=smem, size = 0x4, offset = 0x4, fixed_abs, tag = 'smem constant byte address 0x4 - core index']
  #allocation1 [shape = 'u32[144,128]{1,0:T(1,128)}', space=vmem, size = 0x12000, scoped, tag = 'internal scratch']
  %s0 = inlined_call_operand.vmem [shape: bf16[2,32,64], index: 0, kind: input, shape index: {}]
  %s1 = inlined_call_operand.vmem [shape: f32[32,1], index: 1, kind: input, shape index: {}]
  %s2 = inlined_call_operand.vmem [shape: f32[32,1], index: 2, kind: input, shape index: {}]
  %s3 = inlined_call_operand.vmem [shape: f32[2,8,64], index: 3, kind: output, shape index: {}]
  %s4 = sld [smem:[#allocation0]]
  $region45: #{base_conv_block_cnap.3} parent=0
    _
  %s6 = ssub.s32 1, %s4
  %s7 = scalar_select 0, %s6, %s4
  loop: start=0, step=1, limit=4
  $region2: #{base_conv_block_cnap.3} parent=0 // loop_pre_header
    _
  $region3: #{base_conv_block_cnap.3} parent=0 // loop_header
    %s9 = sphi 0, %s13
    %p10 = scmp.ge.s32.totalorder %s9, 4
    %s16 = sphi 0, %s28
    %s17 = sphi 0, %s24
    %s18 = sphi 0, %s16
    %s19 = sphi 0, %s17
    %s20 = sphi 0, %s18
    %s21 = sphi 0, %s19
    %s33 = sphi 0, %s35
    %s36 = sphi 0, %s33
    %s37 = sphi 0, %s36
    %s53 = sphi 0, %s37
    %s57 = sphi 0, %s57
    %s59 = sphi 0, %s57
    %s60 = sphi 0, %s59
    %s74 = sphi 0, %s60
    %s78 = sphi 0, %s78
    %s80 = sphi 0, %s78
    %s81 = sphi 0, %s80
    %s95 = sphi 0, %s81
    %s103 = sphi 0, %s105
    %s106 = sphi 0, %s103
    %s107 = sphi 0, %s106
    %s123 = sphi 0, %s107
  $region4: #{base_conv_block_cnap.3} parent=0 // loop_header_branch
    %12 = sbr.rel (%p10) target = $region8
  $region5: #{base_conv_block_cnap.3} parent=0 // loop_body
    %s14 = ssub.s32 %s9, 1
    %s15 = ssub.s32 %s9, 2
    %s22 = sadd.s32 1, %s17
    %p23 = scmp.ge.s32.totalorder %s22, 1
    %s24 = scalar_select %p23, 0, %s22
    %s25 = sadd.s32 1, %s16
    %s26 = scalar_select %p23, %s25, %s16
    %p27 = scmp.ge.s32.totalorder %s26, 2
    %s28 = scalar_select %p27, 0, %s26
    %s29 = ssub.s32 %s16, %s28
    %s30 = ssub.s32 %s17, %s24
    %s31 = sor.u32 %s29, %s30
    %p32 = scmp.eq.s32.totalorder %s31, 0
    %s34 = sadd.s32 %s33, 1
    %s35 = scalar_select %p32, %s33, %s34
    %p38 = pneg %p32
    %p39 = scmp.eq.s32.totalorder %s9, 1
    %p40 = por %p38, %p39
    %p41 = scmp.ne.s32.totalorder %s33, %s36
    %p42 = scmp.eq.s32.totalorder %s9, 0
    %p43 = por %p41, %p42
    %p44 = scmp.ne.s32.totalorder %s33, %s36
    %p45 = scmp.eq.s32.totalorder %s14, 1
    %p46 = por %p44, %p45
    %p47 = scmp.ne.s32.totalorder %s36, %s37
    %p48 = scmp.eq.s32.totalorder %s14, 0
    %p49 = por %p47, %p48
    %p50 = scmp.ne.s32.totalorder %s36, %s37
    %p51 = scmp.eq.s32.totalorder %s15, 1
    %p52 = por %p50, %p51
    %p54 = scmp.ne.s32.totalorder %s37, %s53
    %p55 = scmp.eq.s32.totalorder %s15, 0
    %p56 = por %p54, %p55
    %s58 = sadd.s32 %s57, 1
    %p61 = scmp.eq.s32.totalorder %s9, 1
    %p62 = scmp.ne.s32.totalorder %s57, %s59
    %p63 = scmp.eq.s32.totalorder %s9, 0
    %p64 = por %p62, %p63
    %p65 = scmp.ne.s32.totalorder %s57, %s59
    %p66 = scmp.eq.s32.totalorder %s14, 1
    %p67 = por %p65, %p66
    %p68 = scmp.ne.s32.totalorder %s59, %s60
    %p69 = scmp.eq.s32.totalorder %s14, 0
    %p70 = por %p68, %p69
    %p71 = scmp.ne.s32.totalorder %s59, %s60
    %p72 = scmp.eq.s32.totalorder %s15, 1
    %p73 = por %p71, %p72
    %p75 = scmp.ne.s32.totalorder %s60, %s74
    %p76 = scmp.eq.s32.totalorder %s15, 0
    %p77 = por %p75, %p76
    %s79 = sadd.s32 %s78, 1
    %p82 = scmp.eq.s32.totalorder %s9, 1
    %p83 = scmp.ne.s32.totalorder %s78, %s80
    %p84 = scmp.eq.s32.totalorder %s9, 0
    %p85 = por %p83, %p84
    %p86 = scmp.ne.s32.totalorder %s78, %s80
    %p87 = scmp.eq.s32.totalorder %s14, 1
    %p88 = por %p86, %p87
    %p89 = scmp.ne.s32.totalorder %s80, %s81
    %p90 = scmp.eq.s32.totalorder %s14, 0
    %p91 = por %p89, %p90
    %p92 = scmp.ne.s32.totalorder %s80, %s81
    %p93 = scmp.eq.s32.totalorder %s15, 1
    %p94 = por %p92, %p93
    %p96 = scmp.ne.s32.totalorder %s81, %s95
    %p97 = scmp.eq.s32.totalorder %s15, 0
    %p98 = por %p96, %p97
    %s99 = ssub.s32 %s16, %s28
    %s100 = ssub.s32 %s17, %s24
    %s101 = sor.u32 %s99, %s100
    %p102 = scmp.eq.s32.totalorder %s101, 0
    %s104 = sadd.s32 %s103, 1
    %s105 = scalar_select %p102, %s103, %s104
    %p108 = pneg %p102
    %p109 = scmp.eq.s32.totalorder %s9, 1
    %p110 = por %p108, %p109
    %p111 = scmp.ne.s32.totalorder %s103, %s106
    %p112 = scmp.eq.s32.totalorder %s9, 0
    %p113 = por %p111, %p112
    %p114 = scmp.ne.s32.totalorder %s103, %s106
    %p115 = scmp.eq.s32.totalorder %s14, 1
    %p116 = por %p114, %p115
    %p117 = scmp.ne.s32.totalorder %s106, %s107
    %p118 = scmp.eq.s32.totalorder %s14, 0
    %p119 = por %p117, %p118
    %p120 = scmp.ne.s32.totalorder %s106, %s107
    %p121 = scmp.eq.s32.totalorder %s15, 1
    %p122 = por %p120, %p121
    %p124 = scmp.ne.s32.totalorder %s107, %s123
    %p125 = scmp.eq.s32.totalorder %s15, 0
    %p126 = por %p124, %p125
    %p127 = scmp.le.s32.totalorder 1, %s9
    %p128 = scmp.lt.s32.totalorder %s9, 3
    %p129 = pnand %p127, %p128
    %p130 = pneg %p129
    // Predicated region
    $region9: #{base_conv_block_cnap.3} parent=5 // pred_check
      _
    $region10: #{base_conv_block_cnap.3} parent=5 // pred_check_branch
      %132 = sbr.rel (%p129) target = $region12
    $region11: #{base_conv_block_cnap.3} parent=5 // pred_region
      %s133 = ssub.s32 %s9, 1
      // Predicated region
      $region13: #{base_conv_block_cnap.3} parent=11 // pred_check
        %p134 = pneg %p70
      $region14: #{base_conv_block_cnap.3} parent=11 // pred_check_branch
        %136 = sbr.rel (%p134) target = $region16
      $region15: #{base_conv_block_cnap.3} parent=11 // pred_region
        _
      $region16: #{base_conv_block_cnap.3} parent=11 // pred_fallthru
        _
      // Predicated region
      $region17: #{base_conv_block_cnap.3} parent=11 // pred_check
        %p137 = pneg %p91
      $region18: #{base_conv_block_cnap.3} parent=11 // pred_check_branch
        %139 = sbr.rel (%p137) target = $region20
      $region19: #{base_conv_block_cnap.3} parent=11 // pred_region
        _
      $region20: #{base_conv_block_cnap.3} parent=11 // pred_fallthru
        _
    $region12: #{base_conv_block_cnap.3} parent=5 // pred_fallthru
      _
    %p140 = scmp.lt.s32.totalorder %s9, 2
    // Predicated region
    $region21: #{base_conv_block_cnap.3} parent=5 // pred_check
      %p141 = pneg %p140
    $region22: #{base_conv_block_cnap.3} parent=5 // pred_check_branch
      %143 = sbr.rel (%p141) target = $region24
    $region23: #{base_conv_block_cnap.3} parent=5 // pred_region
      // Predicated region
      $region25: #{base_conv_block_cnap.3} parent=23 // pred_check
        %p144 = pneg %p43
      $region26: #{base_conv_block_cnap.3} parent=23 // pred_check_branch
        %146 = sbr.rel (%p144) target = $region28
      $region27: #{base_conv_block_cnap.3} parent=23 // pred_region
        %p147 = scmp.lt.s32.totalorder %s16, 1
        %s148 = scalar_select %p147, %s16, 1
        %p149 = scmp.lt.s32.totalorder %s17, 0
        %s150 = scalar_select %p149, %s17, 0
        %s151 = smul.addr %s148, 4
        %s152 = sadd.s32 %s150, %s151
        %s153 = smul.addr %s152, 4
        %s154 = scalar_lea.vmem %s0, %s153
      $region28: #{base_conv_block_cnap.3} parent=23 // pred_fallthru
        _
    $region24: #{base_conv_block_cnap.3} parent=5 // pred_fallthru
      _
    %p155 = scmp.le.s32.totalorder 1, %s9
    %p156 = scmp.lt.s32.totalorder %s9, 3
    %p157 = pnand %p155, %p156
    %p158 = pneg %p157
    // Predicated region
    $region29: #{base_conv_block_cnap.3} parent=5 // pred_check
      _
    $region30: #{base_conv_block_cnap.3} parent=5 // pred_check_branch
      %160 = sbr.rel (%p157) target = $region32
    $region31: #{base_conv_block_cnap.3} parent=5 // pred_region
      %s161 = ssub.s32 %s9, 1
      %p162 = scmp.lt.s32.totalorder %s18, 1
      %s163 = scalar_select %p162, %s18, 1
      %p164 = scmp.lt.s32.totalorder %s19, 0
      %s165 = scalar_select %p164, %s19, 0
      %s166 = smul.addr %s163, 4
      %s167 = sadd.s32 %s165, %s166
      %s168 = smul.addr %s167, 4
      %s169 = scalar_lea.vmem %s0, %s168
      %p170 = pneg %p49
      %p171 = pneg %p46
      %p172 = pneg %p70
      %p173 = pneg %p67
      %p174 = pneg %p91
      %p175 = pneg %p88
      %p176 = pneg %p119
      %p177 = pneg %p116
      %p178 = scmp.lt.s32.totalorder %s18, 1
      %s179 = scalar_select %p178, %s18, 1
      %p180 = scmp.lt.s32.totalorder %s19, 0
      %s181 = scalar_select %p180, %s19, 0
      %s182 = sadd.s32 %s181, %s179
      %s183 = smul.addr %s182, 8
      %s184 = scalar_lea.vmem %s3, %s183
      %p185 = scmp.lt.s32.totalorder %s18, 1
      %s186 = scalar_select %p185, %s18, 1
      %p187 = scmp.lt.s32.totalorder %s19, 0
      %s188 = scalar_select %p187, %s19, 0
      %s189 = smul.addr %s186, 4
      %s190 = sadd.s32 %s188, %s189
      %s191 = smul.addr %s190, 4
      %s192 = scalar_lea.vmem %s0, %s191
      %p193 = scmp.lt.s32.totalorder %s18, 1
      %s194 = scalar_select %p193, %s18, 1
      %p195 = scmp.lt.s32.totalorder %s19, 0
      %s196 = scalar_select %p195, %s19, 0
      %s197 = sadd.s32 %s196, %s194
      %s198 = smul.addr %s197, 8
      %s199 = scalar_lea.vmem %s3, %s198
      %v200 = vld [vmem:[%s192] sm:$0xf]
      %v201 = vld [vmem:[%s192 + $0x4] sm:$0xf]
      %v202 = vld [vmem:[%s192 + $0x8] sm:$0xf]
      %v203 = vld [vmem:[%s192 + $0xc] sm:$0xf]
      %v204 = vunpack.c.l.bf16 %v200
      %v205 = vunpack.c.l.bf16 %v201
      %v206 = vunpack.c.l.bf16 %v202
      %v207 = vunpack.c.l.bf16 %v203
      %v208 = vld [vmem:[%s1] sm:$0xff]
      %v209 = vld [vmem:[%s1 + $0x8] sm:$0xff]
      %v210 = vld [vmem:[%s1 + $0x10] sm:$0xff]
      %v211 = vld [vmem:[%s1 + $0x18] sm:$0xff]
      %213 = vset.pattern.permute.xlu0 0
      %214 = vperm.xlu0 %213, %v208
      %v215 = vpop.permute.xlu0 %214
      %218 = vset.pattern.permute.xlu0 0
      %219 = vperm.xlu0 %218, %v209
      %v220 = vpop.permute.xlu0 %219
      %223 = vset.pattern.permute.xlu0 0
      %224 = vperm.xlu0 %223, %v210
      %v225 = vpop.permute.xlu0 %224
      %228 = vset.pattern.permute.xlu0 0
      %229 = vperm.xlu0 %228, %v211
      %v230 = vpop.permute.xlu0 %229
      %v232 = vmul.f32 %v204, %v215
      %v233 = vmul.f32 %v205, %v220
      %v234 = vmul.f32 %v206, %v225
      %v235 = vmul.f32 %v207, %v230
      %v236 = vld [vmem:[%s2] sm:$0xff]
      %v237 = vld [vmem:[%s2 + $0x8] sm:$0xff]
      %v238 = vld [vmem:[%s2 + $0x10] sm:$0xff]
      %v239 = vld [vmem:[%s2 + $0x18] sm:$0xff]
      %241 = vset.pattern.permute.xlu0 0
      %242 = vperm.xlu0 %241, %v236
      %v243 = vpop.permute.xlu0 %242
      %246 = vset.pattern.permute.xlu0 0
      %247 = vperm.xlu0 %246, %v237
      %v248 = vpop.permute.xlu0 %247
      %251 = vset.pattern.permute.xlu0 0
      %252 = vperm.xlu0 %251, %v238
      %v253 = vpop.permute.xlu0 %252
      %256 = vset.pattern.permute.xlu0 0
      %257 = vperm.xlu0 %256, %v239
      %v258 = vpop.permute.xlu0 %257
      %v260 = vadd.f32 %v232, %v243
      %v261 = vadd.f32 %v233, %v248
      %v262 = vadd.f32 %v234, %v253
      %v263 = vadd.f32 %v235, %v258
      %v264 = vmax.f32 %v260, 0.0
      %v265 = vmax.f32 %v261, 0.0
      %v266 = vmax.f32 %v262, 0.0
      %v267 = vmax.f32 %v263, 0.0
      %v268 = vmax.f32 %v264, %v265
      %v269 = vmax.f32 %v266, %v267
      %v270 = vmax.f32 %v268, %v269
      %vm271 = vcmask 523264
      %272 = vst.msk [vmem:[%s199] sm:$0xff] %vm271, %v270
      %p273 = scmp.lt.s32.totalorder %s18, 1
      %s274 = scalar_select %p273, %s18, 1
      %p275 = scmp.lt.s32.totalorder %s19, 0
      %s276 = scalar_select %p275, %s19, 0
      %s277 = sadd.s32 %s276, %s274
      %s278 = smul.addr %s277, 8
      %s279 = scalar_lea.vmem %s3, %s278
      // Predicated region
      $region33: #{base_conv_block_cnap.3} parent=31 // pred_check
        %p280 = pneg %p116
      $region34: #{base_conv_block_cnap.3} parent=31 // pred_check_branch
        %282 = sbr.rel (%p280) target = $region36
      $region35: #{base_conv_block_cnap.3} parent=31 // pred_region
        _
      $region36: #{base_conv_block_cnap.3} parent=31 // pred_fallthru
        _
    $region32: #{base_conv_block_cnap.3} parent=5 // pred_fallthru
      _
    %p283 = scmp.le.s32.totalorder 2, %s9
    // Predicated region
    $region37: #{base_conv_block_cnap.3} parent=5 // pred_check
      %p284 = pneg %p283
    $region38: #{base_conv_block_cnap.3} parent=5 // pred_check_branch
      %286 = sbr.rel (%p284) target = $region40
    $region39: #{base_conv_block_cnap.3} parent=5 // pred_region
      %s287 = ssub.s32 %s9, 2
      // Predicated region
      $region41: #{base_conv_block_cnap.3} parent=39 // pred_check
        %p288 = pneg %p122
      $region42: #{base_conv_block_cnap.3} parent=39 // pred_check_branch
        %290 = sbr.rel (%p288) target = $region44
      $region43: #{base_conv_block_cnap.3} parent=39 // pred_region
        %p291 = scmp.lt.s32.totalorder %s20, 1
        %s292 = scalar_select %p291, %s20, 1
        %p293 = scmp.lt.s32.totalorder %s21, 0
        %s294 = scalar_select %p293, %s21, 0
        %s295 = sadd.s32 %s294, %s292
        %s296 = smul.addr %s295, 8
        %s297 = scalar_lea.vmem %s3, %s296
      $region44: #{base_conv_block_cnap.3} parent=39 // pred_fallthru
        _
    $region40: #{base_conv_block_cnap.3} parent=5 // pred_fallthru
      _
  $region6: #{base_conv_block_cnap.3} parent=0 // loop_footer
    %s13 = sadd.s32 1, %s9
  $region7: #{base_conv_block_cnap.3} parent=0 // loop_footer_branch
    %8 = sbr.rel target = $region3
  $region8: #{base_conv_block_cnap.3} parent=0 // loop_exit
    _

// kernel: base_conv_block_cnap.2
$region0: #{base_conv_block_cnap.2}
  #allocation0 [shape = 'u32[]', space=smem, size = 0x4, offset = 0x4, fixed_abs, tag = 'smem constant byte address 0x4 - core index']
  #allocation1 [shape = 'u32[144,128]{1,0:T(1,128)}', space=vmem, size = 0x12000, scoped, tag = 'internal scratch']
  %s0 = inlined_call_operand.vmem [shape: bf16[2,64,64], index: 0, kind: input, shape index: {}]
  %s1 = inlined_call_operand.vmem [shape: bf16[32,64], index: 1, kind: input, shape index: {}]
  %s2 = inlined_call_operand.vmem [shape: bf16[2,32,64], index: 2, kind: output, shape index: {0}]
  %s3 = inlined_call_operand.vmem [shape: f32[2,32,128], index: 3, kind: output, shape index: {1}]
  %s4 = inlined_call_operand.vmem [shape: f32[2,32,128], index: 4, kind: output, shape index: {2}]
  %5 = xla_tuple %s2, %s3, %s4
  %s6 = sld [smem:[#allocation0]]
  $region57: #{base_conv_block_cnap.2} parent=0
    _
  %s8 = ssub.s32 1, %s6
  %s9 = scalar_select 0, %s8, %s6
  loop: start=0, step=1, limit=4
  $region2: #{base_conv_block_cnap.2} parent=0 // loop_pre_header
    _
  $region3: #{base_conv_block_cnap.2} parent=0 // loop_header
    %s11 = sphi 0, %s15
    %p12 = scmp.ge.s32.totalorder %s11, 4
    %s18 = sphi 0, %s30
    %s19 = sphi 0, %s26
    %s20 = sphi 0, %s18
    %s21 = sphi 0, %s19
    %s22 = sphi 0, %s20
    %s23 = sphi 0, %s21
    %s35 = sphi 0, %s37
    %s38 = sphi 0, %s35
    %s39 = sphi 0, %s38
    %s55 = sphi 0, %s39
    %s59 = sphi 0, %s59
    %s61 = sphi 0, %s59
    %s62 = sphi 0, %s61
    %s76 = sphi 0, %s62
    %s84 = sphi 0, %s86
    %s87 = sphi 0, %s84
    %s88 = sphi 0, %s87
    %s104 = sphi 0, %s88
    %s112 = sphi 0, %s114
    %s115 = sphi 0, %s112
    %s116 = sphi 0, %s115
    %s132 = sphi 0, %s116
    %s140 = sphi 0, %s142
    %s143 = sphi 0, %s140
    %s144 = sphi 0, %s143
    %s160 = sphi 0, %s144
  $region4: #{base_conv_block_cnap.2} parent=0 // loop_header_branch
    %14 = sbr.rel (%p12) target = $region8
  $region5: #{base_conv_block_cnap.2} parent=0 // loop_body
    %s16 = ssub.s32 %s11, 1
    %s17 = ssub.s32 %s11, 2
    %s24 = sadd.s32 1, %s19
    %p25 = scmp.ge.s32.totalorder %s24, 1
    %s26 = scalar_select %p25, 0, %s24
    %s27 = sadd.s32 1, %s18
    %s28 = scalar_select %p25, %s27, %s18
    %p29 = scmp.ge.s32.totalorder %s28, 2
    %s30 = scalar_select %p29, 0, %s28
    %s31 = ssub.s32 %s18, %s30
    %s32 = ssub.s32 %s19, %s26
    %s33 = sor.u32 %s31, %s32
    %p34 = scmp.eq.s32.totalorder %s33, 0
    %s36 = sadd.s32 %s35, 1
    %s37 = scalar_select %p34, %s35, %s36
    %p40 = pneg %p34
    %p41 = scmp.eq.s32.totalorder %s11, 1
    %p42 = por %p40, %p41
    %p43 = scmp.ne.s32.totalorder %s35, %s38
    %p44 = scmp.eq.s32.totalorder %s11, 0
    %p45 = por %p43, %p44
    %p46 = scmp.ne.s32.totalorder %s35, %s38
    %p47 = scmp.eq.s32.totalorder %s16, 1
    %p48 = por %p46, %p47
    %p49 = scmp.ne.s32.totalorder %s38, %s39
    %p50 = scmp.eq.s32.totalorder %s16, 0
    %p51 = por %p49, %p50
    %p52 = scmp.ne.s32.totalorder %s38, %s39
    %p53 = scmp.eq.s32.totalorder %s17, 1
    %p54 = por %p52, %p53
    %p56 = scmp.ne.s32.totalorder %s39, %s55
    %p57 = scmp.eq.s32.totalorder %s17, 0
    %p58 = por %p56, %p57
    %s60 = sadd.s32 %s59, 1
    %p63 = scmp.eq.s32.totalorder %s11, 1
    %p64 = scmp.ne.s32.totalorder %s59, %s61
    %p65 = scmp.eq.s32.totalorder %s11, 0
    %p66 = por %p64, %p65
    %p67 = scmp.ne.s32.totalorder %s59, %s61
    %p68 = scmp.eq.s32.totalorder %s16, 1
    %p69 = por %p67, %p68
    %p70 = scmp.ne.s32.totalorder %s61, %s62
    %p71 = scmp.eq.s32.totalorder %s16, 0
    %p72 = por %p70, %p71
    %p73 = scmp.ne.s32.totalorder %s61, %s62
    %p74 = scmp.eq.s32.totalorder %s17, 1
    %p75 = por %p73, %p74
    %p77 = scmp.ne.s32.totalorder %s62, %s76
    %p78 = scmp.eq.s32.totalorder %s17, 0
    %p79 = por %p77, %p78
    %s80 = ssub.s32 %s18, %s30
    %s81 = ssub.s32 %s19, %s26
    %s82 = sor.u32 %s80, %s81
    %p83 = scmp.eq.s32.totalorder %s82, 0
    %s85 = sadd.s32 %s84, 1
    %s86 = scalar_select %p83, %s84, %s85
    %p89 = pneg %p83
    %p90 = scmp.eq.s32.totalorder %s11, 1
    %p91 = por %p89, %p90
    %p92 = scmp.ne.s32.totalorder %s84, %s87
    %p93 = scmp.eq.s32.totalorder %s11, 0
    %p94 = por %p92, %p93
    %p95 = scmp.ne.s32.totalorder %s84, %s87
    %p96 = scmp.eq.s32.totalorder %s16, 1
    %p97 = por %p95, %p96
    %p98 = scmp.ne.s32.totalorder %s87, %s88
    %p99 = scmp.eq.s32.totalorder %s16, 0
    %p100 = por %p98, %p99
    %p101 = scmp.ne.s32.totalorder %s87, %s88
    %p102 = scmp.eq.s32.totalorder %s17, 1
    %p103 = por %p101, %p102
    %p105 = scmp.ne.s32.totalorder %s88, %s104
    %p106 = scmp.eq.s32.totalorder %s17, 0
    %p107 = por %p105, %p106
    %s108 = ssub.s32 %s18, %s30
    %s109 = ssub.s32 %s19, %s26
    %s110 = sor.u32 %s108, %s109
    %p111 = scmp.eq.s32.totalorder %s110, 0
    %s113 = sadd.s32 %s112, 1
    %s114 = scalar_select %p111, %s112, %s113
    %p117 = pneg %p111
    %p118 = scmp.eq.s32.totalorder %s11, 1
    %p119 = por %p117, %p118
    %p120 = scmp.ne.s32.totalorder %s112, %s115
    %p121 = scmp.eq.s32.totalorder %s11, 0
    %p122 = por %p120, %p121
    %p123 = scmp.ne.s32.totalorder %s112, %s115
    %p124 = scmp.eq.s32.totalorder %s16, 1
    %p125 = por %p123, %p124
    %p126 = scmp.ne.s32.totalorder %s115, %s116
    %p127 = scmp.eq.s32.totalorder %s16, 0
    %p128 = por %p126, %p127
    %p129 = scmp.ne.s32.totalorder %s115, %s116
    %p130 = scmp.eq.s32.totalorder %s17, 1
    %p131 = por %p129, %p130
    %p133 = scmp.ne.s32.totalorder %s116, %s132
    %p134 = scmp.eq.s32.totalorder %s17, 0
    %p135 = por %p133, %p134
    %s136 = ssub.s32 %s18, %s30
    %s137 = ssub.s32 %s19, %s26
    %s138 = sor.u32 %s136, %s137
    %p139 = scmp.eq.s32.totalorder %s138, 0
    %s141 = sadd.s32 %s140, 1
    %s142 = scalar_select %p139, %s140, %s141
    %p145 = pneg %p139
    %p146 = scmp.eq.s32.totalorder %s11, 1
    %p147 = por %p145, %p146
    %p148 = scmp.ne.s32.totalorder %s140, %s143
    %p149 = scmp.eq.s32.totalorder %s11, 0
    %p150 = por %p148, %p149
    %p151 = scmp.ne.s32.totalorder %s140, %s143
    %p152 = scmp.eq.s32.totalorder %s16, 1
    %p153 = por %p151, %p152
    %p154 = scmp.ne.s32.totalorder %s143, %s144
    %p155 = scmp.eq.s32.totalorder %s16, 0
    %p156 = por %p154, %p155
    %p157 = scmp.ne.s32.totalorder %s143, %s144
    %p158 = scmp.eq.s32.totalorder %s17, 1
    %p159 = por %p157, %p158
    %p161 = scmp.ne.s32.totalorder %s144, %s160
    %p162 = scmp.eq.s32.totalorder %s17, 0
    %p163 = por %p161, %p162
    %p164 = scmp.le.s32.totalorder 1, %s11
    %p165 = scmp.lt.s32.totalorder %s11, 3
    %p166 = pnand %p164, %p165
    %p167 = pneg %p166
    // Predicated region
    $region9: #{base_conv_block_cnap.2} parent=5 // pred_check
      _
    $region10: #{base_conv_block_cnap.2} parent=5 // pred_check_branch
      %169 = sbr.rel (%p166) target = $region12
    $region11: #{base_conv_block_cnap.2} parent=5 // pred_region
      %s170 = ssub.s32 %s11, 1
      // Predicated region
      $region13: #{base_conv_block_cnap.2} parent=11 // pred_check
        %p171 = pneg %p72
      $region14: #{base_conv_block_cnap.2} parent=11 // pred_check_branch
        %173 = sbr.rel (%p171) target = $region16
      $region15: #{base_conv_block_cnap.2} parent=11 // pred_region
        _
      $region16: #{base_conv_block_cnap.2} parent=11 // pred_fallthru
        _
    $region12: #{base_conv_block_cnap.2} parent=5 // pred_fallthru
      _
    %p174 = scmp.lt.s32.totalorder %s11, 2
    // Predicated region
    $region17: #{base_conv_block_cnap.2} parent=5 // pred_check
      %p175 = pneg %p174
    $region18: #{base_conv_block_cnap.2} parent=5 // pred_check_branch
      %177 = sbr.rel (%p175) target = $region20
    $region19: #{base_conv_block_cnap.2} parent=5 // pred_region
      // Predicated region
      $region21: #{base_conv_block_cnap.2} parent=19 // pred_check
        %p178 = pneg %p45
      $region22: #{base_conv_block_cnap.2} parent=19 // pred_check_branch
        %180 = sbr.rel (%p178) target = $region24
      $region23: #{base_conv_block_cnap.2} parent=19 // pred_region
        %p181 = scmp.lt.s32.totalorder %s18, 1
        %s182 = scalar_select %p181, %s18, 1
        %p183 = scmp.lt.s32.totalorder %s19, 0
        %s184 = scalar_select %p183, %s19, 0
        %s185 = smul.addr %s182, 8
        %s186 = sadd.s32 %s184, %s185
        %s187 = smul.addr %s186, 4
        %s188 = scalar_lea.vmem %s0, %s187
      $region24: #{base_conv_block_cnap.2} parent=19 // pred_fallthru
        _
    $region20: #{base_conv_block_cnap.2} parent=5 // pred_fallthru
      _
    %p189 = scmp.le.s32.totalorder 1, %s11
    %p190 = scmp.lt.s32.totalorder %s11, 3
    %p191 = pnand %p189, %p190
    %p192 = pneg %p191
    // Predicated region
    $region25: #{base_conv_block_cnap.2} parent=5 // pred_check
      _
    $region26: #{base_conv_block_cnap.2} parent=5 // pred_check_branch
      %194 = sbr.rel (%p191) target = $region28
    $region27: #{base_conv_block_cnap.2} parent=5 // pred_region
      %s195 = ssub.s32 %s11, 1
      %p196 = scmp.lt.s32.totalorder %s20, 1
      %s197 = scalar_select %p196, %s20, 1
      %p198 = scmp.lt.s32.totalorder %s21, 0
      %s199 = scalar_select %p198, %s21, 0
      %s200 = smul.addr %s197, 8
      %s201 = sadd.s32 %s199, %s200
      %s202 = smul.addr %s201, 4
      %s203 = scalar_lea.vmem %s0, %s202
      %p204 = pneg %p51
      %p205 = pneg %p48
      %p206 = pneg %p72
      %p207 = pneg %p69
      %p208 = pneg %p100
      %p209 = pneg %p97
      %p210 = scmp.lt.s32.totalorder %s20, 1
      %s211 = scalar_select %p210, %s20, 1
      %p212 = scmp.lt.s32.totalorder %s21, 0
      %s213 = scalar_select %p212, %s21, 0
      %s214 = smul.addr %s211, 4
      %s215 = sadd.s32 %s213, %s214
      %s216 = smul.addr %s215, 4
      %s217 = scalar_lea.vmem %s2, %s216
      %p218 = pneg %p128
      %p219 = pneg %p125
      %p220 = scmp.lt.s32.totalorder %s20, 1
      %s221 = scalar_select %p220, %s20, 1
      %p222 = scmp.lt.s32.totalorder %s21, 0
      %s223 = scalar_select %p222, %s21, 0
      %s224 = smul.addr %s221, 4
      %s225 = sadd.s32 %s223, %s224
      %s226 = smul.addr %s225, 8
      %s227 = scalar_lea.vmem %s3, %s226
      %p228 = pneg %p156
      %p229 = pneg %p153
      %p230 = scmp.lt.s32.totalorder %s20, 1
      %s231 = scalar_select %p230, %s20, 1
      %p232 = scmp.lt.s32.totalorder %s21, 0
      %s233 = scalar_select %p232, %s21, 0
      %s234 = smul.addr %s231, 4
      %s235 = sadd.s32 %s233, %s234
      %s236 = smul.addr %s235, 8
      %s237 = scalar_lea.vmem %s4, %s236
      %p238 = scmp.lt.s32.totalorder %s20, 1
      %s239 = scalar_select %p238, %s20, 1
      %p240 = scmp.lt.s32.totalorder %s21, 0
      %s241 = scalar_select %p240, %s21, 0
      %s242 = smul.addr %s239, 8
      %s243 = sadd.s32 %s241, %s242
      %s244 = smul.addr %s243, 4
      %s245 = scalar_lea.vmem %s0, %s244
      %p246 = scmp.lt.s32.totalorder %s20, 1
      %s247 = scalar_select %p246, %s20, 1
      %p248 = scmp.lt.s32.totalorder %s21, 0
      %s249 = scalar_select %p248, %s21, 0
      %s250 = smul.addr %s247, 4
      %s251 = sadd.s32 %s249, %s250
      %s252 = smul.addr %s251, 4
      %s253 = scalar_lea.vmem %s2, %s252
      %p254 = scmp.lt.s32.totalorder %s20, 1
      %s255 = scalar_select %p254, %s20, 1
      %p256 = scmp.lt.s32.totalorder %s21, 0
      %s257 = scalar_select %p256, %s21, 0
      %s258 = smul.addr %s255, 4
      %s259 = sadd.s32 %s257, %s258
      %s260 = smul.addr %s259, 8
      %s261 = scalar_lea.vmem %s3, %s260
      %p262 = scmp.lt.s32.totalorder %s20, 1
      %s263 = scalar_select %p262, %s20, 1
      %p264 = scmp.lt.s32.totalorder %s21, 0
      %s265 = scalar_select %p264, %s21, 0
      %s266 = smul.addr %s263, 4
      %s267 = sadd.s32 %s265, %s266
      %s268 = smul.addr %s267, 8
      %s269 = scalar_lea.vmem %s4, %s268
      %v271 = vld [vmem:[%s1] sm:$0xf]
      %v272 = vld [vmem:[%s1 + $0x4] sm:$0xf]
      %v273 = vld [vmem:[%s1 + $0x8] sm:$0xf]
      %v274 = vld [vmem:[%s1 + $0xc] sm:$0xf]
      %v275 = vld [vmem:[%s245] sm:$0xf]
      %v276 = vld [vmem:[%s245 + $0x4] sm:$0xf]
      %v277 = vld [vmem:[%s245 + $0x8] sm:$0xf]
      %v278 = vld [vmem:[%s245 + $0xc] sm:$0xf]
      %v279 = vld [vmem:[%s245 + $0x10] sm:$0xf]
      %v280 = vld [vmem:[%s245 + $0x14] sm:$0xf]
      %v281 = vld [vmem:[%s245 + $0x18] sm:$0xf]
      %v282 = vld [vmem:[%s245 + $0x1c] sm:$0xf]
      %v287 = vunpack.c.l.b16 %v271
      %v288 = vunpack.c.l.b16 %v272
      %v289 = vunpack.c.l.b16 %v273
      %v290 = vunpack.c.l.b16 %v274
      %v291 = vpack.c.b16 %v288, %v287
      %v292 = vpack.c.b16 %v290, %v289
      %v301 = vunpack.c.l.b16 %v275
      %v302 = vunpack.c.l.b16 %v276
      %v303 = vunpack.c.l.b16 %v277
      %v304 = vunpack.c.l.b16 %v278
      %v305 = vunpack.c.l.b16 %v279
      %v306 = vunpack.c.l.b16 %v280
      %v307 = vunpack.c.l.b16 %v281
      %v308 = vunpack.c.l.b16 %v282
      %v309 = vpack.c.b16 %v302, %v301
      %v310 = vpack.c.b16 %v304, %v303
      %v311 = vpack.c.b16 %v306, %v305
      %v312 = vpack.c.b16 %v308, %v307
      %vm317 = vcmask 523264
      %v319 = vsel %vm317, %v291, 0
      %v322 = vsel %vm317, %v292, 0
      %324 = vmatprep.subr.bf16.mxu0 0
      %325 = vmatpush1.bf16.msra.mxu0 %v309
      %326 = vmatprep.subr.bf16.mxu0 0
      %327 = vmatpush1.bf16.msra.mxu0 %v310
      %328 = vmatprep.subr.bf16.mxu0 0
      %329 = vmatpush1.bf16.msra.mxu0 %v311
      %330 = vmatprep.subr.bf16.mxu0 0
      %331 = vmatpush1.bf16.msra.mxu0 %v312
      %332 = vmatprep.subr.bf16.mxu0 0
      %333 = vmatpush1.bf16.msra.mxu0 0
      %334 = vmatprep.subr.bf16.mxu0 0
      %335 = vmatpush1.bf16.msra.mxu0 0
      %336 = vmatprep.subr.bf16.mxu0 0
      %337 = vmatpush1.bf16.msra.mxu0 0
      %338 = vmatprep.subr.bf16.mxu0 0
      %339 = vmatpush1.bf16.msra.mxu0 0
      %340 = vmatprep.subr.bf16.mxu0 0
      %341 = vmatpush1.bf16.msra.mxu0 0
      %342 = vmatprep.subr.bf16.mxu0 0
      %343 = vmatpush1.bf16.msra.mxu0 0
      %344 = vmatprep.subr.bf16.mxu0 0
      %345 = vmatpush1.bf16.msra.mxu0 0
      %346 = vmatprep.subr.bf16.mxu0 0
      %347 = vmatpush1.bf16.msra.mxu0 0
      %348 = vmatprep.subr.bf16.mxu0 0
      %349 = vmatpush1.bf16.msra.mxu0 0
      %350 = vmatprep.subr.bf16.mxu0 0
      %351 = vmatpush1.bf16.msra.mxu0 0
      %352 = vmatprep.subr.bf16.mxu0 0
      %353 = vmatpush1.bf16.msra.mxu0 0
      %354 = vmatprep.subr.bf16.mxu0 0
      %355 = vmatpush1.bf16.msra.mxu0 0
      %356 = vmatprep.mubr.bf16.mxu0 0
      %357 = vmatmul.mubr.bf16.gmra.mrb[0].mxu0 %v319
      %v358 = vpop.f32.mrb[0].mxu0
      %v359 = vadd.f32 0.0, %v358
      %v360 = vpop.f32.mrb[0].mxu0
      %v361 = vpop.f32.mrb[0].mxu0
      %v362 = vadd.f32 0.0, %v361
      %v363 = vpop.f32.mrb[0].mxu0
      %364 = vmatprep.mubr.bf16.mxu0 0
      %365 = vmatmul.mubr.bf16.gmra.mrb[0].mxu0 %v322
      %v366 = vpop.f32.mrb[0].mxu0
      %v367 = vadd.f32 0.0, %v366
      %v368 = vpop.f32.mrb[0].mxu0
      %v369 = vpop.f32.mrb[0].mxu0
      %v370 = vadd.f32 0.0, %v369
      %v371 = vpop.f32.mrb[0].mxu0
      %372 = vdwg.mxu0
      %v373 = vpack.c.bf16 %v362, %v359
      %v374 = vpack.c.bf16 %v370, %v367
      %v377 = vunpack.c.l.b16 %v373
      %v378 = vunpack.c.h.b16 %v373
      %v379 = vunpack.c.l.b16 %v374
      %v380 = vunpack.c.h.b16 %v374
      %v381 = vpack.c.b16 %v377, %v377
      %v382 = vpack.c.b16 %v378, %v378
      %v383 = vpack.c.b16 %v379, %v379
      %v384 = vpack.c.b16 %v380, %v380
      %vm389 = vcmask 519168
      %390 = vst.msk [vmem:[%s253] sm:$0xf] %vm389, %v381
      %391 = vst.msk [vmem:[%s253 + $0x4] sm:$0xf] %vm389, %v382
      %392 = vst.msk [vmem:[%s253 + $0x8] sm:$0xf] %vm389, %v383
      %393 = vst.msk [vmem:[%s253 + $0xc] sm:$0xf] %vm389, %v384
      %v394 = vsel %vm317, %v359, 0.0
      %395 = vadd.xlane.f32.xlu0 %v394
      %v396 = vpop.xlane.xlu0 %395
      %v397 = vsel %vm317, %v362, 0.0
      %398 = vadd.xlane.f32.xlu0 %v397
      %v399 = vpop.xlane.xlu0 %398
      %v400 = vsel %vm317, %v367, 0.0
      %401 = vadd.xlane.f32.xlu0 %v400
      %v402 = vpop.xlane.xlu0 %401
      %v403 = vsel %vm317, %v370, 0.0
      %404 = vadd.xlane.f32.xlu0 %v403
      %v405 = vpop.xlane.xlu0 %404
      %v406 = vmul.f32 %v359, %v359
      %v407 = vmul.f32 %v362, %v362
      %v408 = vmul.f32 %v367, %v367
      %v409 = vmul.f32 %v370, %v370
      %v410 = vsel %vm317, %v406, 0.0
      %411 = vadd.xlane.f32.xlu0 %v410
      %v412 = vpop.xlane.xlu0 %411
      %v413 = vsel %vm317, %v407, 0.0
      %414 = vadd.xlane.f32.xlu0 %v413
      %v415 = vpop.xlane.xlu0 %414
      %v416 = vsel %vm317, %v408, 0.0
      %417 = vadd.xlane.f32.xlu0 %v416
      %v418 = vpop.xlane.xlu0 %417
      %v419 = vsel %vm317, %v409, 0.0
      %420 = vadd.xlane.f32.xlu0 %v419
      %v421 = vpop.xlane.xlu0 %420
      %422 = vst [vmem:[%s261] sm:$0xff] %v396
      %423 = vst [vmem:[%s261 + $0x8] sm:$0xff] %v399
      %424 = vst [vmem:[%s261 + $0x10] sm:$0xff] %v402
      %425 = vst [vmem:[%s261 + $0x18] sm:$0xff] %v405
      %426 = vst [vmem:[%s269] sm:$0xff] %v412
      %427 = vst [vmem:[%s269 + $0x8] sm:$0xff] %v415
      %428 = vst [vmem:[%s269 + $0x10] sm:$0xff] %v418
      %429 = vst [vmem:[%s269 + $0x18] sm:$0xff] %v421
      %p430 = scmp.lt.s32.totalorder %s20, 1
      %s431 = scalar_select %p430, %s20, 1
      %p432 = scmp.lt.s32.totalorder %s21, 0
      %s433 = scalar_select %p432, %s21, 0
      %s434 = smul.addr %s431, 4
      %s435 = sadd.s32 %s433, %s434
      %s436 = smul.addr %s435, 4
      %s437 = scalar_lea.vmem %s2, %s436
      %p438 = scmp.lt.s32.totalorder %s20, 1
      %s439 = scalar_select %p438, %s20, 1
      %p440 = scmp.lt.s32.totalorder %s21, 0
      %s441 = scalar_select %p440, %s21, 0
      %s442 = smul.addr %s439, 4
      %s443 = sadd.s32 %s441, %s442
      %s444 = smul.addr %s443, 8
      %s445 = scalar_lea.vmem %s3, %s444
      %p446 = scmp.lt.s32.totalorder %s20, 1
      %s447 = scalar_select %p446, %s20, 1
      %p448 = scmp.lt.s32.totalorder %s21, 0
      %s449 = scalar_select %p448, %s21, 0
      %s450 = smul.addr %s447, 4
      %s451 = sadd.s32 %s449, %s450
      %s452 = smul.addr %s451, 8
      %s453 = scalar_lea.vmem %s4, %s452
      // Predicated region
      $region29: #{base_conv_block_cnap.2} parent=27 // pred_check
        %p454 = pneg %p97
      $region30: #{base_conv_block_cnap.2} parent=27 // pred_check_branch
        %456 = sbr.rel (%p454) target = $region32
      $region31: #{base_conv_block_cnap.2} parent=27 // pred_region
        _
      $region32: #{base_conv_block_cnap.2} parent=27 // pred_fallthru
        _
      // Predicated region
      $region33: #{base_conv_block_cnap.2} parent=27 // pred_check
        %p457 = pneg %p125
      $region34: #{base_conv_block_cnap.2} parent=27 // pred_check_branch
        %459 = sbr.rel (%p457) target = $region36
      $region35: #{base_conv_block_cnap.2} parent=27 // pred_region
        _
      $region36: #{base_conv_block_cnap.2} parent=27 // pred_fallthru
        _
      // Predicated region
      $region37: #{base_conv_block_cnap.2} parent=27 // pred_check
        %p460 = pneg %p153
      $region38: #{base_conv_block_cnap.2} parent=27 // pred_check_branch
        %462 = sbr.rel (%p460) target = $region40
      $region39: #{base_conv_block_cnap.2} parent=27 // pred_region
        _
      $region40: #{base_conv_block_cnap.2} parent=27 // pred_fallthru
        _
    $region28: #{base_conv_block_cnap.2} parent=5 // pred_fallthru
      _
    %p463 = scmp.le.s32.totalorder 2, %s11
    // Predicated region
    $region41: #{base_conv_block_cnap.2} parent=5 // pred_check
      %p464 = pneg %p463
    $region42: #{base_conv_block_cnap.2} parent=5 // pred_check_branch
      %466 = sbr.rel (%p464) target = $region44
    $region43: #{base_conv_block_cnap.2} parent=5 // pred_region
      %s467 = ssub.s32 %s11, 2
      // Predicated region
      $region45: #{base_conv_block_cnap.2} parent=43 // pred_check
        %p468 = pneg %p103
      $region46: #{base_conv_block_cnap.2} parent=43 // pred_check_branch
        %470 = sbr.rel (%p468) target = $region48
      $region47: #{base_conv_block_cnap.2} parent=43 // pred_region
        %p471 = scmp.lt.s32.totalorder %s22, 1
        %s472 = scalar_select %p471, %s22, 1
        %p473 = scmp.lt.s32.totalorder %s23, 0
        %s474 = scalar_select %p473, %s23, 0
        %s475 = smul.addr %s472, 4
        %s476 = sadd.s32 %s474, %s475
        %s477 = smul.addr %s476, 4
        %s478 = scalar_lea.vmem %s2, %s477
      $region48: #{base_conv_block_cnap.2} parent=43 // pred_fallthru
        _
      // Predicated region
      $region49: #{base_conv_block_cnap.2} parent=43 // pred_check
        %p479 = pneg %p131
      $region50: #{base_conv_block_cnap.2} parent=43 // pred_check_branch
        %481 = sbr.rel (%p479) target = $region52
      $region51: #{base_conv_block_cnap.2} parent=43 // pred_region
        %p482 = scmp.lt.s32.totalorder %s22, 1
        %s483 = scalar_select %p482, %s22, 1
        %p484 = scmp.lt.s32.totalorder %s23, 0
        %s485 = scalar_select %p484, %s23, 0
        %s486 = smul.addr %s483, 4
        %s487 = sadd.s32 %s485, %s486
        %s488 = smul.addr %s487, 8
        %s489 = scalar_lea.vmem %s3, %s488
      $region52: #{base_conv_block_cnap.2} parent=43 // pred_fallthru
        _
      // Predicated region
      $region53: #{base_conv_block_cnap.2} parent=43 // pred_check
        %p490 = pneg %p159
      $region54: #{base_conv_block_cnap.2} parent=43 // pred_check_branch
        %492 = sbr.rel (%p490) target = $region56
      $region55: #{base_conv_block_cnap.2} parent=43 // pred_region
        %p493 = scmp.lt.s32.totalorder %s22, 1
        %s494 = scalar_select %p493, %s22, 1
        %p495 = scmp.lt.s32.totalorder %s23, 0
        %s496 = scalar_select %p495, %s23, 0
        %s497 = smul.addr %s494, 4
        %s498 = sadd.s32 %s496, %s497
        %s499 = smul.addr %s498, 8
        %s500 = scalar_lea.vmem %s4, %s499
      $region56: #{base_conv_block_cnap.2} parent=43 // pred_fallthru
        _
    $region44: #{base_conv_block_cnap.2} parent=5 // pred_fallthru
      _
  $region6: #{base_conv_block_cnap.2} parent=0 // loop_footer
    %s15 = sadd.s32 1, %s11
  $region7: #{base_conv_block_cnap.2} parent=0 // loop_footer_branch
    %10 = sbr.rel target = $region3
  $region8: #{base_conv_block_cnap.2} parent=0 // loop_exit
    _

</llo_original>
